<compile_context>
chip_gen: v5e
topology: v5e:2x2
jax: 0.10.0
libtpu: 0.0.40
codegen_flags: <defaults>
</compile_context>

<pallas_src>
import jax
import jax.numpy as jnp
from jax.experimental import pallas as pl
from jax.experimental.pallas import tpu as pltpu

INPUT_LEN = 32
HIDDEN1 = 6
OUTPUT = 1      # must stay 1 for the folded layout below
FOLD = 4        # batch rows folded per 128-lane vreg row (4 * 32 = 128)


def mlp_kernel(x_ref, w1_ref, b1_ref, w2_ref, b2_ref, o_ref):
    # x: (tb4, 128)  -- 4 batch rows per folded row
    # w1_bd: (128, 24), b1_bd: (1, 24), w2_bd: (24, 4), b2: (1,1) in SMEM
    x = x_ref[...]

    # fc1 on the MXU with a full K=128 contraction, f32 accumulation.
    h = jnp.dot(x, w1_ref[...], preferred_element_type=jnp.float32) + b1_ref[...]

    # sigmoid(h) = 1 / (1 + exp(-h)); exp and the approximate reciprocal stay on
    # the (otherwise idle) EUP slot, one Newton step on the VPU restores ~f32
    # accuracy.  Clamp guards exp overflow for very negative h (sigmoid ~ 0).
    z = jnp.minimum(-h, 60.0)
    ex = jnp.exp(z)                                   # EUP
    denom = 1.0 + ex
    r = pl.reciprocal(denom, approx=True)             # EUP vrcp
    s = r * (2.0 - denom * r)                         # Newton refinement (VPU)

    # fc2: block-diagonal (24, 4) matmul -> one output column per folded row.
    y = jnp.dot(s, w2_ref[...], preferred_element_type=jnp.float32) + b2_ref[0, 0]
    o_ref[...] = y.astype(o_ref.dtype)


def net_forward(x, w1, b1, w2, b2, *, tb=32768):
    """y = sigmoid(x @ w1 + b1) @ w2 + b2, batch-tiled, 4-row-folded Pallas kernel.

    tb = batch rows per grid step.  Default 32768 (~18 MiB of double-buffered
    VMEM after the fold); on v7x you can go to 65536, on v5e 8192-16384 also
    works within its smaller default scoped VMEM (we raise the limit anyway).
    """
    B, K = x.shape
    assert K == INPUT_LEN
    assert w2.shape == (HIDDEN1, OUTPUT) and OUTPUT == 1

    # --- fold 4 batch rows per 128-lane row (free row-major reshape) ---------
    rem = B % FOLD
    if rem:
        # Only hit when B % 4 != 0: pads at most 3 rows.  Tile-level raggedness
        # (B/4 not a multiple of tb/4) is handled by Pallas' edge-block masking,
        # so we never materialize a full padded copy of x.
        x = jnp.pad(x, ((0, FOLD - rem), (0, 0)))
    Bp = x.shape[0]
    B4 = Bp // FOLD
    xf = x.reshape(B4, FOLD * INPUT_LEN)              # (B/4, 128), lane-dense

    # --- tile sizing ----------------------------------------------------------
    tb = min(max(tb, FOLD), Bp)
    tb4 = max(1, min(tb // FOLD, B4))
    if tb4 < B4:                                      # interior tiles: (8,128)-aligned
        tb4 = max(8, (tb4 // 8) * 8)
        tb4 = min(tb4, B4)
    num_blocks = pl.cdiv(B4, tb4)

    # --- block-diagonal weights (tiny, built once, resident in VMEM) ---------
    eye = jnp.eye(FOLD, dtype=jnp.float32)
    w1_bd = jnp.kron(eye, w1.astype(jnp.float32)).astype(x.dtype)     # (128, 24)
    b1_bd = jnp.tile(jnp.reshape(b1, (1, HIDDEN1)).astype(jnp.float32),
                     (1, FOLD))                                        # (1, 24)
    w2_bd = jnp.kron(eye, w2.astype(jnp.float32))                      # (24, 4)
    b2_s = jnp.reshape(b2, (1, 1)).astype(jnp.float32)                 # SMEM scalar

    # --- VMEM budget: double-buffered x + out blocks, plus weights/margin ----
    itemsize = jnp.dtype(x.dtype).itemsize
    x_block_bytes = tb4 * FOLD * INPUT_LEN * itemsize
    out_block_bytes = tb4 * 128 * 4                    # (tb4, 4) pads to 128 lanes in VMEM
    vmem_limit = int(max(2 * (x_block_bytes + out_block_bytes) + (2 << 20),
                         32 << 20))

    out = pl.pallas_call(
        mlp_kernel,
        out_shape=jax.ShapeDtypeStruct((B4, FOLD), jnp.float32),
        grid_spec=pl.GridSpec(
            grid=(num_blocks,),
            in_specs=[
                # folded x streams through the pipeline, one batch tile per step
                pl.BlockSpec((tb4, FOLD * INPUT_LEN), lambda i: (i, 0)),
                # weights / bias resident in VMEM across all steps
                pl.BlockSpec((FOLD * INPUT_LEN, FOLD * HIDDEN1), lambda i: (0, 0)),
                pl.BlockSpec((1, FOLD * HIDDEN1), lambda i: (0, 0)),
                pl.BlockSpec((FOLD * HIDDEN1, FOLD), lambda i: (0, 0)),
                # b2 is a scalar -> SMEM (no padded VMEM tile / DMA)
                pl.BlockSpec((1, 1), lambda i: (0, 0),
                             memory_space=pltpu.MemorySpace.SMEM),
            ],
            out_specs=pl.BlockSpec((tb4, FOLD), lambda i: (i, 0)),
        ),
        compiler_params=pltpu.CompilerParams(
            dimension_semantics=("parallel",),
            vmem_limit_bytes=vmem_limit),
    )(xf, w1_bd, b1_bd, w2_bd, b2_s)

    # (B4, 4) -> (Bp, 1) is a free row-major reshape; drop any tail pad rows.
    return out.reshape(Bp, OUTPUT)[:B]


def init_params(key):
    """Deterministic init mimicking PyTorch nn.Linear default (uniform +-1/sqrt(fan_in))."""
    k1, k2, k3, k4 = jax.random.split(key, 4)
    bound1 = 1.0 / jnp.sqrt(INPUT_LEN)
    bound2 = 1.0 / jnp.sqrt(HIDDEN1)
    # Stored as (in, out) so the kernel computes x @ W (PyTorch stores (out, in)).
    w1 = jax.random.uniform(k1, (INPUT_LEN, HIDDEN1), jnp.float32, -bound1, bound1)
    b1 = jax.random.uniform(k2, (1, HIDDEN1), jnp.float32, -bound1, bound1)
    w2 = jax.random.uniform(k3, (HIDDEN1, OUTPUT), jnp.float32, -bound2, bound2)
    b2 = jax.random.uniform(k4, (1, OUTPUT), jnp.float32, -bound2, bound2)
    return w1, b1, w2, b2


def _ref(x, w1, b1, w2, b2):
    return jax.nn.sigmoid(x.astype(jnp.float32) @ w1 + b1) @ w2 + b2


if __name__ == "__main__":
    key = jax.random.PRNGKey(0)
    pkey, xkey1, xkey2, xkey3 = jax.random.split(key, 4)
    w1, b1, w2, b2 = init_params(pkey)

    # Single-tile path (small B).
    B = 8
    x = jax.random.normal(xkey1, (B, INPUT_LEN), jnp.float32)
    out = jax.block_until_ready(net_forward(x, w1, b1, w2, b2))
    assert out.shape == (B, OUTPUT)
    assert jnp.allclose(out, _ref(x, w1, b1, w2, b2), atol=2e-5, rtol=1e-4)

    # Multi-tile path with a ragged last block (75 folded rows, tile of 32).
    B2 = 300
    x2 = jax.random.normal(xkey2, (B2, INPUT_LEN), jnp.float32)
    out2 = jax.block_until_ready(net_forward(x2, w1, b1, w2, b2, tb=128))
    assert out2.shape == (B2, OUTPUT)
    assert jnp.allclose(out2, _ref(x2, w1, b1, w2, b2), atol=2e-5, rtol=1e-4)

    # B % 4 != 0 -> tiny tail pad + ragged last block.
    B3 = 301
    x3 = jax.random.normal(xkey3, (B3, INPUT_LEN), jnp.float32)
    out3 = jax.block_until_ready(net_forward(x3, w1, b1, w2, b2, tb=128))
    assert out3.shape == (B3, OUTPUT)
    assert jnp.allclose(out3, _ref(x3, w1, b1, w2, b2), atol=2e-5, rtol=1e-4)

    # NOTE: for production on v6e/v7x, keep x in bfloat16 upstream (the kernel
    # already accumulates fc1 in f32) to halve HBM traffic; loosen tolerances.
    print("KERNEL_OK")
</pallas_src>

<mosaic_0001>
module attributes {stable_mosaic.version = 11 : i64} {
  func.func @mlp_kernel(%arg0: i32, %arg1: memref<2x128xf32, #tpu.memory_space<vmem>>, %arg2: memref<128x24xf32, #tpu.memory_space<vmem>>, %arg3: memref<1x24xf32, #tpu.memory_space<vmem>>, %arg4: memref<24x4xf32, #tpu.memory_space<vmem>>, %arg5: memref<1x1xf32, #tpu.memory_space<smem>>, %arg6: memref<2x4xf32, #tpu.memory_space<vmem>>) attributes {dimension_semantics = [#tpu.dimension_semantics<parallel>], iteration_bounds = array<i64: 1>, scalar_prefetch = 0 : i64, scratch_operands = 0 : i64, tpu.core_type = #tpu.core_type<tc>, window_params = [{transform_indices = @transform_0, window_bounds = array<i64: 2, 128>}, {pipeline_mode = #tpu.pipeline_mode<synchronous>, transform_indices = @transform_1, window_bounds = array<i64: 128, 24>}, {pipeline_mode = #tpu.pipeline_mode<synchronous>, transform_indices = @transform_2, window_bounds = array<i64: 1, 24>}, {pipeline_mode = #tpu.pipeline_mode<synchronous>, transform_indices = @transform_3, window_bounds = array<i64: 24, 4>}, {transform_indices = @transform_4, window_bounds = array<i64: 1, 1>}, {transform_indices = @transform_5, window_bounds = array<i64: 2, 4>}]} {
    %c0 = arith.constant 0 : index
    %c0_0 = arith.constant 0 : index
    %0 = vector.load %arg1[%c0, %c0_0] : memref<2x128xf32, #tpu.memory_space<vmem>>, vector<2x128xf32>
    %c0_1 = arith.constant 0 : index
    %c0_2 = arith.constant 0 : index
    %1 = vector.load %arg2[%c0_1, %c0_2] : memref<128x24xf32, #tpu.memory_space<vmem>>, vector<128x24xf32>
    %cst = arith.constant dense<0.000000e+00> : vector<2x24xf32>
    %2 = tpu.matmul %0, %1, %cst {dimension_numbers = #tpu.dot_dimension_numbers<[1], [0], [0], [1], [0, 0, 1, 1], [], []>} : vector<2x128xf32>, vector<128x24xf32>, vector<2x24xf32> -> vector<2x24xf32>
    %c0_3 = arith.constant 0 : index
    %c0_4 = arith.constant 0 : index
    %3 = vector.load %arg3[%c0_3, %c0_4] : memref<1x24xf32, #tpu.memory_space<vmem>>, vector<1x24xf32>
    %4 = vector.broadcast %3 : vector<1x24xf32> to vector<2x24xf32>
    %5 = arith.addf %2, %4 : vector<2x24xf32>
    %cst_5 = arith.constant 0.000000e+00 : f32
    %6 = vector.broadcast %cst_5 : f32 to vector<2x24xf32>
    %7 = arith.subf %6, %5 : vector<2x24xf32>
    %cst_6 = arith.constant 6.000000e+01 : f32
    %8 = vector.broadcast %cst_6 : f32 to vector<2x24xf32>
    %9 = arith.minimumf %7, %8 : vector<2x24xf32>
    %10 = math.exp %9 : vector<2x24xf32>
    %cst_7 = arith.constant 1.000000e+00 : f32
    %11 = vector.broadcast %cst_7 : f32 to vector<2x24xf32>
    %12 = arith.addf %11, %10 : vector<2x24xf32>
    %13 = tpu.reciprocal %12 {approx = true} : vector<2x24xf32> -> vector<2x24xf32>
    %14 = arith.mulf %12, %13 : vector<2x24xf32>
    %cst_8 = arith.constant 2.000000e+00 : f32
    %15 = vector.broadcast %cst_8 : f32 to vector<2x24xf32>
    %16 = arith.subf %15, %14 : vector<2x24xf32>
    %17 = arith.mulf %13, %16 : vector<2x24xf32>
    %c0_9 = arith.constant 0 : index
    %c0_10 = arith.constant 0 : index
    %18 = vector.load %arg4[%c0_9, %c0_10] : memref<24x4xf32, #tpu.memory_space<vmem>>, vector<24x4xf32>
    %cst_11 = arith.constant dense<0.000000e+00> : vector<2x4xf32>
    %19 = tpu.matmul %17, %18, %cst_11 {dimension_numbers = #tpu.dot_dimension_numbers<[1], [0], [0], [1], [0, 0, 1, 1], [], []>} : vector<2x24xf32>, vector<24x4xf32>, vector<2x4xf32> -> vector<2x4xf32>
    %c0_12 = arith.constant 0 : index
    %c0_13 = arith.constant 0 : index
    %20 = memref.load %arg5[%c0_12, %c0_13] : memref<1x1xf32, #tpu.memory_space<smem>>
    %21 = vector.broadcast %20 : f32 to vector<2x4xf32>
    %22 = arith.addf %19, %21 : vector<2x4xf32>
    %c0_14 = arith.constant 0 : index
    %c0_15 = arith.constant 0 : index
    %23 = vector.load %arg6[%c0_14, %c0_15] : memref<2x4xf32, #tpu.memory_space<vmem>>, vector<2x4xf32>
    tpu.vector_store %arg6[%c0_14, %c0_15], %22 {strides = array<i32>} : memref<2x4xf32, #tpu.memory_space<vmem>>, vector<2x4xf32>,
    return
  }
  func.func @transform_0(%arg0: i32) -> (i32, i32) {
    %c0_i32 = arith.constant 0 : i32
    %c0_i32_0 = arith.constant 0 : i32
    return %arg0, %c0_i32 : i32, i32
  }
  func.func @transform_1(%arg0: i32) -> (i32, i32) {
    %c0_i32 = arith.constant 0 : i32
    %c0_i32_0 = arith.constant 0 : i32
    %c0_i32_1 = arith.constant 0 : i32
    return %c0_i32, %c0_i32_0 : i32, i32
  }
  func.func @transform_2(%arg0: i32) -> (i32, i32) {
    %c0_i32 = arith.constant 0 : i32
    %c0_i32_0 = arith.constant 0 : i32
    %c0_i32_1 = arith.constant 0 : i32
    return %c0_i32, %c0_i32_0 : i32, i32
  }
  func.func @transform_3(%arg0: i32) -> (i32, i32) {
    %c0_i32 = arith.constant 0 : i32
    %c0_i32_0 = arith.constant 0 : i32
    %c0_i32_1 = arith.constant 0 : i32
    return %c0_i32, %c0_i32_0 : i32, i32
  }
  func.func @transform_4(%arg0: i32) -> (i32, i32) {
    %c0_i32 = arith.constant 0 : i32
    %c0_i32_0 = arith.constant 0 : i32
    %c0_i32_1 = arith.constant 0 : i32
    return %c0_i32, %c0_i32_0 : i32, i32
  }
  func.func @transform_5(%arg0: i32) -> (i32, i32) {
    %c0_i32 = arith.constant 0 : i32
    %c0_i32_0 = arith.constant 0 : i32
    return %arg0, %c0_i32 : i32, i32
  }
}

</mosaic_0001>

<llo_original>
// kernel: tpu_custom_call.1
$region0: #{tpu_custom_call.1}
  #allocation0 [shape = 'u32[]', space=smem, size = 0x4, offset = 0x4, fixed_abs, tag = 'smem constant byte address 0x4 - core index']
  #allocation1 [shape = 'u32[72,128]{1,0:T(1,128)}', space=vmem, size = 0x9000, scoped, tag = 'internal scratch']
  #allocation2 [shape = 'f32[1,1]{1,0:T(1,128)S(6)}', space=smem, size = 0x200, scoped, tag = 'scoped memory for tpu_custom_call.1']
  %s0 = inlined_call_operand.vmem [shape: f32[2,128], index: 0, kind: input, shape index: {}]
  %s1 = inlined_call_operand.vmem [shape: f32[128,24], index: 1, kind: input, shape index: {}]
  %s2 = inlined_call_operand.vmem [shape: f32[1,24], index: 2, kind: input, shape index: {}]
  %s3 = inlined_call_operand.vmem [shape: f32[24,4], index: 3, kind: input, shape index: {}]
  %s4 = inlined_call_operand.<no memory space> [shape: f32[1,1], index: 4, kind: input, shape index: {}]
  %s5 = inlined_call_operand.hbm [shape: f32[2,4], index: 5, kind: output, shape index: {}]
  %s6 = sld [smem:[#allocation0]]
  $region30: #{tpu_custom_call.1} parent=0
    _
  %s8 = ssub.s32 1, %s6
  %s9 = scalar_select 0, %s8, %s6
  %10 = sst [smem:[#allocation2]] %s4
  $region1: #{tpu_custom_call.1} parent=0
    #allocation3 [shape = 'u8[1024]{0}', space=vmem, size = 0x400, scoped, tag = 'output window, operand 0, single buffered']
    #allocation4 [shape = 's32[1]{0}', space=sflag, size = 0x4, scoped, tag = 'scoped memory for tpu_custom_call.1']
    %11 = vsyncpa [#allocation4], 0
    // Predicated region
    $region2: #{tpu_custom_call.1} parent=1 // pred_check
      _
    $region3: #{tpu_custom_call.1} parent=1 // pred_check_branch
      %13 = sbr.rel (0) target = $region5
    $region4: #{tpu_custom_call.1} parent=1 // pred_region
      _
    $region5: #{tpu_custom_call.1} parent=1 // pred_fallthru
      _
    // Predicated region
    $region6: #{tpu_custom_call.1} parent=1 // pred_check
      _
    $region7: #{tpu_custom_call.1} parent=1 // pred_check_branch
      %15 = sbr.rel (0) target = $region9
    $region8: #{tpu_custom_call.1} parent=1 // pred_region
      _
    $region9: #{tpu_custom_call.1} parent=1 // pred_fallthru
      _
    // Predicated region
    $region10: #{tpu_custom_call.1} parent=1 // pred_check
      _
    $region11: #{tpu_custom_call.1} parent=1 // pred_check_branch
      %17 = sbr.rel (0) target = $region13
    $region12: #{tpu_custom_call.1} parent=1 // pred_region
      _
    $region13: #{tpu_custom_call.1} parent=1 // pred_fallthru
      _
    // Predicated region
    $region14: #{tpu_custom_call.1} parent=1 // pred_check
      _
    $region15: #{tpu_custom_call.1} parent=1 // pred_check_branch
      %19 = sbr.rel (0) target = $region17
    $region16: #{tpu_custom_call.1} parent=1 // pred_region
      _
    $region17: #{tpu_custom_call.1} parent=1 // pred_fallthru
      _
    // Predicated region
    $region18: #{tpu_custom_call.1} parent=1 // pred_check
      _
    $region19: #{tpu_custom_call.1} parent=1 // pred_check_branch
      %21 = sbr.rel (0) target = $region21
    $region20: #{tpu_custom_call.1} parent=1 // pred_region
      _
    $region21: #{tpu_custom_call.1} parent=1 // pred_fallthru
      _
    %v22 = vld [vmem:[%s0] sm:$0x3]
    %v23 = vld [vmem:[%s1] sm:$0xff]
    %v24 = vld [vmem:[%s1 + $0x8] sm:$0xff]
    %v25 = vld [vmem:[%s1 + $0x10] sm:$0xff]
    %v26 = vld [vmem:[%s1 + $0x18] sm:$0xff]
    %v27 = vld [vmem:[%s1 + $0x20] sm:$0xff]
    %v28 = vld [vmem:[%s1 + $0x28] sm:$0xff]
    %v29 = vld [vmem:[%s1 + $0x30] sm:$0xff]
    %v30 = vld [vmem:[%s1 + $0x38] sm:$0xff]
    %v31 = vld [vmem:[%s1 + $0x40] sm:$0xff]
    %v32 = vld [vmem:[%s1 + $0x48] sm:$0xff]
    %v33 = vld [vmem:[%s1 + $0x50] sm:$0xff]
    %v34 = vld [vmem:[%s1 + $0x58] sm:$0xff]
    %v35 = vld [vmem:[%s1 + $0x60] sm:$0xff]
    %v36 = vld [vmem:[%s1 + $0x68] sm:$0xff]
    %v37 = vld [vmem:[%s1 + $0x70] sm:$0xff]
    %v38 = vld [vmem:[%s1 + $0x78] sm:$0xff]
    %v39 = vld [vmem:[%s2] sm:$0x1]
    %v41 = vperm.slane %v39, 0
    %43 = vmatpush.msra.mxu0 %v38
    %44 = vmatpush.msra.mxu0 %v37
    %45 = vmatpush.msra.mxu0 %v36
    %46 = vmatpush.msra.mxu0 %v35
    %47 = vmatpush.msra.mxu0 %v34
    %48 = vmatpush.msra.mxu0 %v33
    %49 = vmatpush.msra.mxu0 %v32
    %50 = vmatpush.msra.mxu0 %v31
    %51 = vmatpush.msra.mxu0 %v30
    %52 = vmatpush.msra.mxu0 %v29
    %53 = vmatpush.msra.mxu0 %v28
    %54 = vmatpush.msra.mxu0 %v27
    %55 = vmatpush.msra.mxu0 %v26
    %56 = vmatpush.msra.mxu0 %v25
    %57 = vmatpush.msra.mxu0 %v24
    %58 = vmatpush.msra.mxu0 %v23
    %59 = vmatmul.f32.gmra.mxu0 %v22
    %v60 = vpop.f32.mrf.mxu0
    %v61 = vadd.f32 %v41, %v60
    %62 = vdwg.mxu0
    %v63 = vsub.f32 0.0, %v61
    %v64 = vmin.f32 %v63, 60.0
    %v65 = vmul.f32 %v64, 1.442695
    %v66 = vpow.pop %v65
    %v67 = vadd.f32 %v66, 1.0
    %v68 = vrcp.pop %v67
    %v69 = vmul.f32 %v67, %v68
    %v70 = vsub.f32 2.0, %v69
    %v71 = vmul.f32 %v68, %v70
    %v72 = vld [vmem:[%s3] sm:$0xff]
    %v73 = vld [vmem:[%s3 + $0x8] sm:$0xff]
    %v74 = vld [vmem:[%s3 + $0x10] sm:$0xff]
    %s75 = sld [smem:[#allocation2]]
    %v76 = vstv %s75
    %vm77 = vcmask 195584
    %v79 = vsel %vm77, %v71, 0
    %81 = vmatpush.msra.mxu0 0.0
    %82 = vmatpush.msra.mxu0 0.0
    %83 = vmatpush.msra.mxu0 0.0
    %84 = vmatpush.msra.mxu0 0.0
    %85 = vmatpush.msra.mxu0 0.0
    %86 = vmatpush.msra.mxu0 0.0
    %87 = vmatpush.msra.mxu0 0.0
    %88 = vmatpush.msra.mxu0 0.0
    %89 = vmatpush.msra.mxu0 0.0
    %90 = vmatpush.msra.mxu0 0.0
    %91 = vmatpush.msra.mxu0 0.0
    %92 = vmatpush.msra.mxu0 0.0
    %93 = vmatpush.msra.mxu0 0.0
    %94 = vmatpush.msra.mxu0 %v74
    %95 = vmatpush.msra.mxu0 %v73
    %96 = vmatpush.msra.mxu0 %v72
    %97 = vmatmul.f32.gmra.mxu0 %v79
    %v98 = vpop.f32.mrf.mxu0
    %v99 = vadd.f32 %v76, %v98
    %100 = vdwg.mxu0
    %vm101 = vcmask 25600
    %102 = vst.msk [vmem:[#allocation3] sm:$0x3] %vm101, %v99
    // Predicated region
    $region22: #{tpu_custom_call.1} parent=1 // pred_check
      _
    $region23: #{tpu_custom_call.1} parent=1 // pred_check_branch
      %104 = sbr.rel (0) target = $region25
    $region24: #{tpu_custom_call.1} parent=1 // pred_region
      %106 = vsyncadd [#allocation4], 0
      %s108 = sshll.u32 [#allocation3], 4
      %s109 = int_to_ptr.vmem [resolvable:$true] %s108
      %s110 = sshll.u32 %s5, 4
      %s111 = int_to_ptr.hbm [resolvable:$true] %s110
      %113 = dma.vmem_to_hbm [thread:$0]  %s109, 32, %s111, [#allocation4]
    $region25: #{tpu_custom_call.1} parent=1 // pred_fallthru
      _
    // Predicated region
    $region26: #{tpu_custom_call.1} parent=1 // pred_check
      _
    $region27: #{tpu_custom_call.1} parent=1 // pred_check_branch
      %115 = sbr.rel (0) target = $region29
    $region28: #{tpu_custom_call.1} parent=1 // pred_region
      %117 = dma.done [#allocation4], 32
    $region29: #{tpu_custom_call.1} parent=1 // pred_fallthru
      _
    %118 = vsyncpa [#allocation4], 1

</llo_original>
